<compile_context>
chip_gen: v6e
topology: v6e:2x2x1
jax: 0.10.0
libtpu: 0.0.40
codegen_flags: <defaults>
</compile_context>

<pallas_src>
import jax
import jax.numpy as jnp
from jax.experimental import pallas as pl
from jax.experimental.pallas import tpu as pltpu

_LANE = 128


def _round_up(x, m):
    return ((x + m - 1) // m) * m


def _vmem_capacity_bytes():
    try:
        return int(pltpu.get_tpu_info().vmem_capacity_bytes)
    except Exception:
        return 64 * 1024 * 1024  # conservative default: v7x per-TensorCore VMEM


# --------------------------------------------------------------------------- #
# Kernels
# --------------------------------------------------------------------------- #
def _qnet_kernel_resident(x_ref, w1_ref, b1_ref, w2_ref, b2_ref, o_ref):
    # hidden = relu(x @ W1 + b1), fp32 accumulation on the MXU; b1/b2 kept fp32.
    h = jnp.dot(x_ref[...], w1_ref[...], preferred_element_type=jnp.float32)
    h = jnp.maximum(h + b1_ref[...], 0.0)
    out = jnp.dot(h.astype(w2_ref.dtype), w2_ref[...],
                  preferred_element_type=jnp.float32)
    o_ref[...] = (out + b2_ref[...]).astype(o_ref.dtype)


def _qnet_kernel_htiled(x_ref, w1_ref, b1_ref, w2_ref, b2_ref, o_ref, acc_ref):
    # Hidden dimension tiled along grid axis 1 ("arbitrary"):
    #   acc += relu(x @ W1[:, j] + b1[j]) @ W2[j, :]   (exact, ReLU is elementwise in H)
    j = pl.program_id(1)

    @pl.when(j == 0)
    def _():
        acc_ref[...] = jnp.zeros_like(acc_ref)

    h = jnp.dot(x_ref[...], w1_ref[...], preferred_element_type=jnp.float32)
    h = jnp.maximum(h + b1_ref[...], 0.0)
    acc_ref[...] += jnp.dot(h.astype(w2_ref.dtype), w2_ref[...],
                            preferred_element_type=jnp.float32)

    @pl.when(j == pl.num_programs(1) - 1)
    def _():
        o_ref[...] = (acc_ref[...] + b2_ref[...]).astype(o_ref.dtype)


# --------------------------------------------------------------------------- #
# Parameter preparation (hoisted out of the per-call path)
# --------------------------------------------------------------------------- #
def prepare_qnet_params(w1, b1, w2, b2, *, compute_dtype=jnp.bfloat16):
    """Pad weights/biases to lane-dense shapes and cast ONCE at model-init time.

    w1: [input, hidden]   (pre-transposed vs. PyTorch's [hidden, input])
    b1: [hidden]
    w2: [hidden, output]
    b2: [output]
    """
    cdt = jnp.dtype(compute_dtype)
    K, H = w1.shape
    N = w2.shape[1]
    K_pad, H_pad, N_pad = (_round_up(d, _LANE) for d in (K, H, N))
    w1p = jnp.zeros((K_pad, H_pad), cdt).at[:K, :H].set(w1.astype(cdt))
    b1p = jnp.zeros((1, H_pad), jnp.float32).at[0, :H].set(b1.astype(jnp.float32))
    w2p = jnp.zeros((H_pad, N_pad), cdt).at[:H, :N].set(w2.astype(cdt))
    b2p = jnp.zeros((1, N_pad), jnp.float32).at[0, :N].set(b2.astype(jnp.float32))
    return dict(w1=w1p, b1=b1p, w2=w2p, b2=b2p,
                K=K, H=H, N=N, K_pad=K_pad, H_pad=H_pad, N_pad=N_pad, cdt=cdt)


# --------------------------------------------------------------------------- #
# Forward
# --------------------------------------------------------------------------- #
def qnetwork_forward(x, params, *, tb=None, out_dtype=None, h_tile=None):
    """QNetwork forward: relu(x @ w1 + b1) @ w2 + b2, with pre-prepared params."""
    cdt = params["cdt"]
    K, H, N = params["K"], params["H"], params["N"]
    K_pad, H_pad, N_pad = params["K_pad"], params["H_pad"], params["N_pad"]
    B = x.shape[0]
    assert x.shape[1] == K, "input feature size mismatch"
    out_dtype = jnp.dtype(out_dtype) if out_dtype is not None else jnp.dtype(x.dtype)

    # --- batch tile: MXU-filling rows, >=4 pipeline steps at large batch -----
    sub = 16 if cdt == jnp.dtype(jnp.bfloat16) else 8
    if tb is None:
        tb = 256 if B >= 4 * 256 else _round_up(B, sub)
    tb = max(sub, _round_up(min(tb, _round_up(B, sub)), sub))
    B_pad = _round_up(B, tb)

    # --- pad x only when actually needed (skip extra HBM copy on aligned shapes)
    if (B_pad, K_pad) == (B, K) and x.dtype == cdt:
        xp = x
    else:
        xp = jnp.zeros((B_pad, K_pad), cdt).at[:B, :K].set(x.astype(cdt))

    isz = cdt.itemsize
    osz = out_dtype.itemsize
    cap = _vmem_capacity_bytes()

    # --- VMEM budget & schedule selection ------------------------------------
    w_bytes = (K_pad * H_pad + H_pad * N_pad) * isz
    act_bytes = (2 * tb * K_pad * isz          # x tiles (double-buffered)
                 + 2 * tb * N_pad * osz        # out tiles (double-buffered)
                 + tb * H_pad * 4              # fp32 hidden intermediate
                 + 2 * (H_pad + N_pad) * 4)    # biases
    resident_single = act_bytes + w_bytes       # weights single-buffered
    resident_double = act_bytes + 2 * w_bytes   # worst case (fallback buffering)

    use_htiled = (h_tile is not None) or (resident_single > int(0.55 * cap))

    if use_htiled:
        fixed = (2 * tb * K_pad * isz + 2 * tb * N_pad * osz
                 + tb * N_pad * 4 + 2 * N_pad * 4)
        per_th = 2 * (K_pad + N_pad) * isz + 8 + tb * 4
        if h_tile is None:
            budget = int(0.4 * cap)
            th = max(_LANE, ((budget - fixed) // max(per_th, 1)) // _LANE * _LANE)
            th = min(th, H_pad)
        else:
            th = max(_LANE, _round_up(min(h_tile, H_pad), _LANE))
        while H_pad % th != 0:   # keep blocks exact divisors of the padded hidden dim
            th -= _LANE
        vmem_needed = fixed + per_th * th
    else:
        th = H_pad
        vmem_needed = resident_double

    vmem_limit = int(min(max(vmem_needed * 5 // 4, 16 * 1024 * 1024),
                         int(cap * 0.75)))     # ~96 MiB on v5e/v6e, ~48 MiB on v7x

    flops = 2 * B_pad * (K_pad * H_pad + H_pad * N_pad)
    bytes_accessed = int(xp.size * isz
                         + params["w1"].size * isz + params["w2"].size * isz
                         + params["b1"].size * 4 + params["b2"].size * 4
                         + B_pad * N_pad * osz)
    cost = pl.CostEstimate(flops=int(flops), transcendentals=0,
                           bytes_accessed=bytes_accessed)

    # Deep-buffer the recurring x stream only on big-VMEM parts with real headroom.
    want_x3 = (not use_htiled and cap >= (96 << 20) and B_pad // tb >= 3
               and resident_double + tb * K_pad * isz < int(cap * 0.5))

    def _build_and_call(use_pm):
        def spec(shape, imap, buffers=None):
            if use_pm and buffers is not None:
                return pl.BlockSpec(shape, imap, pipeline_mode=pl.Buffered(buffers))
            return pl.BlockSpec(shape, imap)

        if use_htiled:
            grid = (B_pad // tb, H_pad // th)
            in_specs = [
                spec((tb, K_pad), lambda i, j: (i, 0)),             # x (re-used over j)
                spec((K_pad, th), lambda i, j: (0, j)),             # W1 column tile
                spec((1, th), lambda i, j: (0, j)),                 # b1 tile
                spec((th, N_pad), lambda i, j: (j, 0)),             # W2 row tile
                spec((1, N_pad), lambda i, j: (0, 0), buffers=1),   # b2 (constant)
            ]
            out_spec = spec((tb, N_pad), lambda i, j: (i, 0))
            scratch = [pltpu.VMEM((tb, N_pad), jnp.float32)]
            kernel = _qnet_kernel_htiled
            dims = ("parallel", "arbitrary")
        else:
            grid = (B_pad // tb,)
            in_specs = [
                spec((tb, K_pad), lambda i: (i, 0), buffers=3 if want_x3 else None),
                spec((K_pad, H_pad), lambda i: (0, 0), buffers=1),  # W1 resident
                spec((1, H_pad), lambda i: (0, 0), buffers=1),      # b1 resident
                spec((H_pad, N_pad), lambda i: (0, 0), buffers=1),  # W2 resident
                spec((1, N_pad), lambda i: (0, 0), buffers=1),      # b2 resident
            ]
            out_spec = spec((tb, N_pad), lambda i: (i, 0))
            scratch = []
            kernel = _qnet_kernel_resident
            dims = ("parallel",)

        return pl.pallas_call(
            kernel,
            out_shape=jax.ShapeDtypeStruct((B_pad, N_pad), out_dtype),
            grid_spec=pltpu.PrefetchScalarGridSpec(
                num_scalar_prefetch=0,
                grid=grid,
                in_specs=in_specs,
                out_specs=out_spec,
                scratch_shapes=scratch),
            compiler_params=pltpu.CompilerParams(
                dimension_semantics=dims,
                vmem_limit_bytes=vmem_limit),
            cost_estimate=cost,
        )(xp, params["w1"], params["b1"], params["w2"], params["b2"])

    try:
        out_padded = _build_and_call(True)
    except Exception:
        # pipeline_mode / Buffered(1) not accepted by this jax build: retry with
        # default double-buffering (only reachable on eager calls).
        out_padded = _build_and_call(False)

    if (B_pad, N_pad) == (B, N):
        return out_padded
    return out_padded[:B, :N]


def reference_forward(x, w1, b1, w2, b2):
    h = jnp.maximum(x @ w1 + b1[None, :], 0.0)
    return h @ w2 + b2[None, :]


# --------------------------------------------------------------------------- #
# Self-test
# --------------------------------------------------------------------------- #
if __name__ == "__main__":
    B = 32
    input_size = 32
    hidden_size = 64
    output_size = 16

    key = jax.random.PRNGKey(0)
    kx, kw1, kb1, kw2, kb2 = jax.random.split(key, 5)

    # Deterministic init mimicking PyTorch Linear's U(-1/sqrt(fan_in), 1/sqrt(fan_in)).
    x = jax.random.normal(kx, (B, input_size), dtype=jnp.float32)
    lim1 = 1.0 / jnp.sqrt(jnp.float32(input_size))
    w1 = jax.random.uniform(kw1, (input_size, hidden_size), jnp.float32, -lim1, lim1)
    b1 = jax.random.uniform(kb1, (hidden_size,), jnp.float32, -lim1, lim1)
    lim2 = 1.0 / jnp.sqrt(jnp.float32(hidden_size))
    w2 = jax.random.uniform(kw2, (hidden_size, output_size), jnp.float32, -lim2, lim2)
    b2 = jax.random.uniform(kb2, (output_size,), jnp.float32, -lim2, lim2)

    ref = reference_forward(x, w1, b1, w2, b2)

    # 1) fp32 exact path (weight-resident schedule).
    params_f32 = prepare_qnet_params(w1, b1, w2, b2, compute_dtype=jnp.float32)
    out_f32 = jax.block_until_ready(qnetwork_forward(x, params_f32))
    assert out_f32.shape == (B, output_size)
    assert jnp.allclose(out_f32, ref, atol=1e-5, rtol=1e-5), "fp32 mismatch vs reference"

    # 2) default bf16-matmul / fp32-accumulate path.
    params_bf16 = prepare_qnet_params(w1, b1, w2, b2)
    out_bf16 = jax.block_until_ready(qnetwork_forward(x, params_bf16))
    assert out_bf16.shape == (B, output_size)
    assert jnp.allclose(out_bf16, ref, atol=1e-1, rtol=1e-1), "bf16 mismatch vs reference"

    # 3) H-tiled accumulator fallback (forced): hidden=256 split into 2 tiles of 128.
    hidden2 = 256
    k2 = jax.random.split(jax.random.PRNGKey(1), 4)
    lim1b = 1.0 / jnp.sqrt(jnp.float32(input_size))
    lim2b = 1.0 / jnp.sqrt(jnp.float32(hidden2))
    w1b = jax.random.uniform(k2[0], (input_size, hidden2), jnp.float32, -lim1b, lim1b)
    b1b = jax.random.uniform(k2[1], (hidden2,), jnp.float32, -lim1b, lim1b)
    w2b = jax.random.uniform(k2[2], (hidden2, output_size), jnp.float32, -lim2b, lim2b)
    b2b = jax.random.uniform(k2[3], (output_size,), jnp.float32, -lim2b, lim2b)
    ref2 = reference_forward(x, w1b, b1b, w2b, b2b)
    params_ht = prepare_qnet_params(w1b, b1b, w2b, b2b, compute_dtype=jnp.float32)
    out_ht = jax.block_until_ready(qnetwork_forward(x, params_ht, h_tile=128))
    assert out_ht.shape == (B, output_size)
    assert jnp.allclose(out_ht, ref2, atol=1e-5, rtol=1e-5), "H-tiled mismatch vs reference"

    print("KERNEL_OK")
</pallas_src>

<mosaic_0001>
module attributes {stable_mosaic.version = 11 : i64} {
  func.func @_qnet_kernel_resident(%arg0: i32, %arg1: memref<32x128xf32, #tpu.memory_space<vmem>>, %arg2: memref<128x128xf32, #tpu.memory_space<vmem>>, %arg3: memref<1x128xf32, #tpu.memory_space<vmem>>, %arg4: memref<128x128xf32, #tpu.memory_space<vmem>>, %arg5: memref<1x128xf32, #tpu.memory_space<vmem>>, %arg6: memref<32x128xf32, #tpu.memory_space<vmem>>) attributes {dimension_semantics = [#tpu.dimension_semantics<parallel>], iteration_bounds = array<i64: 1>, scalar_prefetch = 0 : i64, scratch_operands = 0 : i64, tpu.core_type = #tpu.core_type<tc>, window_params = [{transform_indices = @transform_0, window_bounds = array<i64: 32, 128>}, {pipeline_mode = #tpu.pipeline_mode<synchronous>, transform_indices = @transform_1, window_bounds = array<i64: 128, 128>}, {pipeline_mode = #tpu.pipeline_mode<synchronous>, transform_indices = @transform_2, window_bounds = array<i64: 1, 128>}, {pipeline_mode = #tpu.pipeline_mode<synchronous>, transform_indices = @transform_3, window_bounds = array<i64: 128, 128>}, {pipeline_mode = #tpu.pipeline_mode<synchronous>, transform_indices = @transform_4, window_bounds = array<i64: 1, 128>}, {transform_indices = @transform_5, window_bounds = array<i64: 32, 128>}]} {
    %c0 = arith.constant 0 : index
    %c0_0 = arith.constant 0 : index
    %0 = vector.load %arg1[%c0, %c0_0] : memref<32x128xf32, #tpu.memory_space<vmem>>, vector<32x128xf32>
    %c0_1 = arith.constant 0 : index
    %c0_2 = arith.constant 0 : index
    %1 = vector.load %arg2[%c0_1, %c0_2] : memref<128x128xf32, #tpu.memory_space<vmem>>, vector<128x128xf32>
    %cst = arith.constant dense<0.000000e+00> : vector<32x128xf32>
    %2 = tpu.matmul %0, %1, %cst {dimension_numbers = #tpu.dot_dimension_numbers<[1], [0], [0], [1], [0, 0, 1, 1], [], []>} : vector<32x128xf32>, vector<128x128xf32>, vector<32x128xf32> -> vector<32x128xf32>
    %c0_3 = arith.constant 0 : index
    %c0_4 = arith.constant 0 : index
    %3 = vector.load %arg3[%c0_3, %c0_4] : memref<1x128xf32, #tpu.memory_space<vmem>>, vector<1x128xf32>
    %4 = vector.broadcast %3 : vector<1x128xf32> to vector<32x128xf32>
    %5 = arith.addf %2, %4 : vector<32x128xf32>
    %cst_5 = arith.constant 0.000000e+00 : f32
    %6 = vector.broadcast %cst_5 : f32 to vector<32x128xf32>
    %7 = arith.maximumf %5, %6 : vector<32x128xf32>
    %c0_6 = arith.constant 0 : index
    %c0_7 = arith.constant 0 : index
    %8 = vector.load %arg4[%c0_6, %c0_7] : memref<128x128xf32, #tpu.memory_space<vmem>>, vector<128x128xf32>
    %cst_8 = arith.constant dense<0.000000e+00> : vector<32x128xf32>
    %9 = tpu.matmul %7, %8, %cst_8 {dimension_numbers = #tpu.dot_dimension_numbers<[1], [0], [0], [1], [0, 0, 1, 1], [], []>} : vector<32x128xf32>, vector<128x128xf32>, vector<32x128xf32> -> vector<32x128xf32>
    %c0_9 = arith.constant 0 : index
    %c0_10 = arith.constant 0 : index
    %10 = vector.load %arg5[%c0_9, %c0_10] : memref<1x128xf32, #tpu.memory_space<vmem>>, vector<1x128xf32>
    %11 = vector.broadcast %10 : vector<1x128xf32> to vector<32x128xf32>
    %12 = arith.addf %9, %11 : vector<32x128xf32>
    %c0_11 = arith.constant 0 : index
    %c0_12 = arith.constant 0 : index
    %13 = vector.load %arg6[%c0_11, %c0_12] : memref<32x128xf32, #tpu.memory_space<vmem>>, vector<32x128xf32>
    tpu.vector_store %arg6[%c0_11, %c0_12], %12 {strides = array<i32>} : memref<32x128xf32, #tpu.memory_space<vmem>>, vector<32x128xf32>,
    return
  }
  func.func @transform_0(%arg0: i32) -> (i32, i32) {
    %c0_i32 = arith.constant 0 : i32
    %c0_i32_0 = arith.constant 0 : i32
    return %arg0, %c0_i32 : i32, i32
  }
  func.func @transform_1(%arg0: i32) -> (i32, i32) {
    %c0_i32 = arith.constant 0 : i32
    %c0_i32_0 = arith.constant 0 : i32
    %c0_i32_1 = arith.constant 0 : i32
    return %c0_i32, %c0_i32_0 : i32, i32
  }
  func.func @transform_2(%arg0: i32) -> (i32, i32) {
    %c0_i32 = arith.constant 0 : i32
    %c0_i32_0 = arith.constant 0 : i32
    %c0_i32_1 = arith.constant 0 : i32
    return %c0_i32, %c0_i32_0 : i32, i32
  }
  func.func @transform_3(%arg0: i32) -> (i32, i32) {
    %c0_i32 = arith.constant 0 : i32
    %c0_i32_0 = arith.constant 0 : i32
    %c0_i32_1 = arith.constant 0 : i32
    return %c0_i32, %c0_i32_0 : i32, i32
  }
  func.func @transform_4(%arg0: i32) -> (i32, i32) {
    %c0_i32 = arith.constant 0 : i32
    %c0_i32_0 = arith.constant 0 : i32
    %c0_i32_1 = arith.constant 0 : i32
    return %c0_i32, %c0_i32_0 : i32, i32
  }
  func.func @transform_5(%arg0: i32) -> (i32, i32) {
    %c0_i32 = arith.constant 0 : i32
    %c0_i32_0 = arith.constant 0 : i32
    return %arg0, %c0_i32 : i32, i32
  }
}

module attributes {stable_mosaic.version = 11 : i64} {
  func.func @_qnet_kernel_resident(%arg0: i32, %arg1: memref<32x128xf32, #tpu.memory_space<vmem>>, %arg2: memref<128x128xf32, #tpu.memory_space<vmem>>, %arg3: memref<1x128xf32, #tpu.memory_space<vmem>>, %arg4: memref<128x128xf32, #tpu.memory_space<vmem>>, %arg5: memref<1x128xf32, #tpu.memory_space<vmem>>, %arg6: memref<32x128xf32, #tpu.memory_space<vmem>>) attributes {dimension_semantics = [#tpu.dimension_semantics<parallel>], iteration_bounds = array<i64: 1>, scalar_prefetch = 0 : i64, scratch_operands = 0 : i64, tpu.core_type = #tpu.core_type<tc>, window_params = [{transform_indices = @transform_0, window_bounds = array<i64: 32, 128>}, {pipeline_mode = #tpu.pipeline_mode<synchronous>, transform_indices = @transform_1, window_bounds = array<i64: 128, 128>}, {pipeline_mode = #tpu.pipeline_mode<synchronous>, transform_indices = @transform_2, window_bounds = array<i64: 1, 128>}, {pipeline_mode = #tpu.pipeline_mode<synchronous>, transform_indices = @transform_3, window_bounds = array<i64: 128, 128>}, {pipeline_mode = #tpu.pipeline_mode<synchronous>, transform_indices = @transform_4, window_bounds = array<i64: 1, 128>}, {transform_indices = @transform_5, window_bounds = array<i64: 32, 128>}]} {
    %c0 = arith.constant 0 : index
    %c0_0 = arith.constant 0 : index
    %0 = vector.load %arg1[%c0, %c0_0] : memref<32x128xf32, #tpu.memory_space<vmem>>, vector<32x128xf32>
    %c0_1 = arith.constant 0 : index
    %c0_2 = arith.constant 0 : index
    %1 = vector.load %arg2[%c0_1, %c0_2] : memref<128x128xf32, #tpu.memory_space<vmem>>, vector<128x128xf32>
    %cst = arith.constant dense<0.000000e+00> : vector<32x128xf32>
    %2 = tpu.matmul %0, %1, %cst {dimension_numbers = #tpu.dot_dimension_numbers<[1], [0], [0], [1], [0, 0, 1, 1], [], []>} : vector<32x128xf32>, vector<128x128xf32>, vector<32x128xf32> -> vector<32x128xf32>
    %c0_3 = arith.constant 0 : index
    %c0_4 = arith.constant 0 : index
    %3 = vector.load %arg3[%c0_3, %c0_4] : memref<1x128xf32, #tpu.memory_space<vmem>>, vector<1x128xf32>
    %4 = vector.broadcast %3 : vector<1x128xf32> to vector<32x128xf32>
    %5 = arith.addf %2, %4 : vector<32x128xf32>
    %cst_5 = arith.constant 0.000000e+00 : f32
    %6 = vector.broadcast %cst_5 : f32 to vector<32x128xf32>
    %7 = arith.maximumf %5, %6 : vector<32x128xf32>
    %c0_6 = arith.constant 0 : index
    %c0_7 = arith.constant 0 : index
    %8 = vector.load %arg4[%c0_6, %c0_7] : memref<128x128xf32, #tpu.memory_space<vmem>>, vector<128x128xf32>
    %cst_8 = arith.constant dense<0.000000e+00> : vector<32x128xf32>
    %9 = tpu.matmul %7, %8, %cst_8 {dimension_numbers = #tpu.dot_dimension_numbers<[1], [0], [0], [1], [0, 0, 1, 1], [], []>} : vector<32x128xf32>, vector<128x128xf32>, vector<32x128xf32> -> vector<32x128xf32>
    %c0_9 = arith.constant 0 : index
    %c0_10 = arith.constant 0 : index
    %10 = vector.load %arg5[%c0_9, %c0_10] : memref<1x128xf32, #tpu.memory_space<vmem>>, vector<1x128xf32>
    %11 = vector.broadcast %10 : vector<1x128xf32> to vector<32x128xf32>
    %12 = arith.addf %9, %11 : vector<32x128xf32>
    %c0_11 = arith.constant 0 : index
    %c0_12 = arith.constant 0 : index
    %13 = vector.load %arg6[%c0_11, %c0_12] : memref<32x128xf32, #tpu.memory_space<vmem>>, vector<32x128xf32>
    tpu.vector_store %arg6[%c0_11, %c0_12], %12 {strides = array<i32>} : memref<32x128xf32, #tpu.memory_space<vmem>>, vector<32x128xf32>,
    return
  }
  func.func @transform_0(%arg0: i32) -> (i32, i32) {
    %c0_i32 = arith.constant 0 : i32
    %c0_i32_0 = arith.constant 0 : i32
    return %arg0, %c0_i32 : i32, i32
  }
  func.func @transform_1(%arg0: i32) -> (i32, i32) {
    %c0_i32 = arith.constant 0 : i32
    %c0_i32_0 = arith.constant 0 : i32
    %c0_i32_1 = arith.constant 0 : i32
    return %c0_i32, %c0_i32_0 : i32, i32
  }
  func.func @transform_2(%arg0: i32) -> (i32, i32) {
    %c0_i32 = arith.constant 0 : i32
    %c0_i32_0 = arith.constant 0 : i32
    %c0_i32_1 = arith.constant 0 : i32
    return %c0_i32, %c0_i32_0 : i32, i32
  }
  func.func @transform_3(%arg0: i32) -> (i32, i32) {
    %c0_i32 = arith.constant 0 : i32
    %c0_i32_0 = arith.constant 0 : i32
    %c0_i32_1 = arith.constant 0 : i32
    return %c0_i32, %c0_i32_0 : i32, i32
  }
  func.func @transform_4(%arg0: i32) -> (i32, i32) {
    %c0_i32 = arith.constant 0 : i32
    %c0_i32_0 = arith.constant 0 : i32
    %c0_i32_1 = arith.constant 0 : i32
    return %c0_i32, %c0_i32_0 : i32, i32
  }
  func.func @transform_5(%arg0: i32) -> (i32, i32) {
    %c0_i32 = arith.constant 0 : i32
    %c0_i32_0 = arith.constant 0 : i32
    return %arg0, %c0_i32 : i32, i32
  }
}

</mosaic_0001>

<llo_original>
// kernel: tpu_custom_call.1
$region0: #{tpu_custom_call.1}
  #allocation0 [shape = 'u32[]', space=smem, size = 0x4, offset = 0x4, fixed_abs, tag = 'smem constant byte address 0x4 - core index']
  #allocation1 [shape = 'u32[144,128]{1,0:T(1,128)}', space=vmem, size = 0x12000, scoped, tag = 'internal scratch']
  %s0 = inlined_call_operand.hbm [shape: f32[32,128], index: 0, kind: input, shape index: {}]
  %s1 = inlined_call_operand.hbm [shape: f32[128,128], index: 1, kind: input, shape index: {}]
  %s2 = inlined_call_operand.vmem [shape: f32[1,128], index: 2, kind: input, shape index: {}]
  %s3 = inlined_call_operand.hbm [shape: f32[128,128], index: 3, kind: input, shape index: {}]
  %s4 = inlined_call_operand.vmem [shape: f32[1,128], index: 4, kind: input, shape index: {}]
  %s5 = inlined_call_operand.hbm [shape: f32[32,128], index: 5, kind: output, shape index: {}]
  %s6 = sld [smem:[#allocation0]]
  $region42: #{tpu_custom_call.1} parent=0
    _
  %s8 = ssub.s32 1, %s6
  %s9 = scalar_select 0, %s8, %s6
  $region1: #{tpu_custom_call.1} parent=0
    #allocation2 [shape = 'u8[16384]{0}', space=vmem, size = 0x4000, scoped, tag = 'input window, operand 0, single buffered']
    #allocation3 [shape = 's32[1]{0}', space=sflag, size = 0x4, scoped, tag = 'scoped memory for tpu_custom_call.1']
    #allocation4 [shape = 's32[1]{0}', space=sflag, size = 0x4, scoped, tag = 'scoped memory for tpu_custom_call.1']
    #allocation5 [shape = 'u8[65536]{0}', space=vmem, size = 0x10000, scoped, tag = 'input window, operand 1, single buffered']
    #allocation6 [shape = 's32[1]{0}', space=sflag, size = 0x4, scoped, tag = 'scoped memory for tpu_custom_call.1']
    #allocation7 [shape = 'u8[65536]{0}', space=vmem, size = 0x10000, scoped, tag = 'input window, operand 3, single buffered']
    #allocation8 [shape = 'u8[16384]{0}', space=vmem, size = 0x4000, scoped, tag = 'output window, operand 0, single buffered']
    %10 = vsyncpa [#allocation3], 0
    %11 = vsyncpa [#allocation6], 0
    %12 = vsyncpa [#allocation4], 0
    // Predicated region
    $region2: #{tpu_custom_call.1} parent=1 // pred_check
      _
    $region3: #{tpu_custom_call.1} parent=1 // pred_check_branch
      %14 = sbr.rel (0) target = $region5
    $region4: #{tpu_custom_call.1} parent=1 // pred_region
      %s16 = ssub.s32 512, 512
      %17 = vsyncadd [#allocation3], %s16
      %s18 = sshll.u32 [#allocation2], 4
      %s19 = int_to_ptr.vmem [resolvable:$true] %s18
      %24 = dma.hbm_to_vmem [thread:$0]  %s0, 512, %s19, [#allocation3], 128, 128, 8
    $region5: #{tpu_custom_call.1} parent=1 // pred_fallthru
      _
    // Predicated region
    $region6: #{tpu_custom_call.1} parent=1 // pred_check
      _
    $region7: #{tpu_custom_call.1} parent=1 // pred_check_branch
      %26 = sbr.rel (0) target = $region9
    $region8: #{tpu_custom_call.1} parent=1 // pred_region
      %s28 = ssub.s32 2048, 2048
      %29 = vsyncadd [#allocation6], %s28
      %s30 = sshll.u32 [#allocation5], 4
      %s31 = int_to_ptr.vmem [resolvable:$true] %s30
      %36 = dma.hbm_to_vmem [thread:$0]  %s1, 2048, %s31, [#allocation6], 128, 128, 8
    $region9: #{tpu_custom_call.1} parent=1 // pred_fallthru
      _
    // Predicated region
    $region10: #{tpu_custom_call.1} parent=1 // pred_check
      _
    $region11: #{tpu_custom_call.1} parent=1 // pred_check_branch
      %38 = sbr.rel (0) target = $region13
    $region12: #{tpu_custom_call.1} parent=1 // pred_region
      _
    $region13: #{tpu_custom_call.1} parent=1 // pred_fallthru
      _
    // Predicated region
    $region14: #{tpu_custom_call.1} parent=1 // pred_check
      _
    $region15: #{tpu_custom_call.1} parent=1 // pred_check_branch
      %40 = sbr.rel (0) target = $region17
    $region16: #{tpu_custom_call.1} parent=1 // pred_region
      %s42 = ssub.s32 2048, 2048
      %43 = vsyncadd [#allocation6], %s42
      %s44 = sshll.u32 [#allocation7], 4
      %s45 = int_to_ptr.vmem [resolvable:$true] %s44
      %50 = dma.hbm_to_vmem [thread:$0]  %s3, 2048, %s45, [#allocation6], 128, 128, 8
    $region17: #{tpu_custom_call.1} parent=1 // pred_fallthru
      _
    // Predicated region
    $region18: #{tpu_custom_call.1} parent=1 // pred_check
      _
    $region19: #{tpu_custom_call.1} parent=1 // pred_check_branch
      %52 = sbr.rel (0) target = $region21
    $region20: #{tpu_custom_call.1} parent=1 // pred_region
      _
    $region21: #{tpu_custom_call.1} parent=1 // pred_fallthru
      _
    // Predicated region
    $region22: #{tpu_custom_call.1} parent=1 // pred_check
      _
    $region23: #{tpu_custom_call.1} parent=1 // pred_check_branch
      %54 = sbr.rel (0) target = $region25
    $region24: #{tpu_custom_call.1} parent=1 // pred_region
      %55 = dma.done [#allocation3], 512
    $region25: #{tpu_custom_call.1} parent=1 // pred_fallthru
      _
    // Predicated region
    $region26: #{tpu_custom_call.1} parent=1 // pred_check
      _
    $region27: #{tpu_custom_call.1} parent=1 // pred_check_branch
      %57 = sbr.rel (0) target = $region29
    $region28: #{tpu_custom_call.1} parent=1 // pred_region
      %58 = dma.done [#allocation6], 2048
    $region29: #{tpu_custom_call.1} parent=1 // pred_fallthru
      _
    // Predicated region
    $region30: #{tpu_custom_call.1} parent=1 // pred_check
      _
    $region31: #{tpu_custom_call.1} parent=1 // pred_check_branch
      %60 = sbr.rel (0) target = $region33
    $region32: #{tpu_custom_call.1} parent=1 // pred_region
      %61 = dma.done [#allocation6], 2048
    $region33: #{tpu_custom_call.1} parent=1 // pred_fallthru
      _
    %v62 = vld [vmem:[#allocation2] sm:$0xff]
    %v63 = vld [vmem:[#allocation2 + $0x8] sm:$0xff]
    %v64 = vld [vmem:[#allocation2 + $0x10] sm:$0xff]
    %v65 = vld [vmem:[#allocation2 + $0x18] sm:$0xff]
    %v66 = vld [vmem:[#allocation5] sm:$0xff]
    %v67 = vld [vmem:[#allocation5 + $0x8] sm:$0xff]
    %v68 = vld [vmem:[#allocation5 + $0x10] sm:$0xff]
    %v69 = vld [vmem:[#allocation5 + $0x18] sm:$0xff]
    %v70 = vld [vmem:[#allocation5 + $0x20] sm:$0xff]
    %v71 = vld [vmem:[#allocation5 + $0x28] sm:$0xff]
    %v72 = vld [vmem:[#allocation5 + $0x30] sm:$0xff]
    %v73 = vld [vmem:[#allocation5 + $0x38] sm:$0xff]
    %v74 = vld [vmem:[#allocation5 + $0x40] sm:$0xff]
    %v75 = vld [vmem:[#allocation5 + $0x48] sm:$0xff]
    %v76 = vld [vmem:[#allocation5 + $0x50] sm:$0xff]
    %v77 = vld [vmem:[#allocation5 + $0x58] sm:$0xff]
    %v78 = vld [vmem:[#allocation5 + $0x60] sm:$0xff]
    %v79 = vld [vmem:[#allocation5 + $0x68] sm:$0xff]
    %v80 = vld [vmem:[#allocation5 + $0x70] sm:$0xff]
    %v81 = vld [vmem:[#allocation5 + $0x78] sm:$0xff]
    %v82 = vld [vmem:[%s2] sm:$0x1]
    %v84 = vlaneseq
    %v85 = vshrl.u32 %v84, 7
    %v86 = vsub.s32 0, %v85
    %v87 = vrot.slane %v82, %v86
    %89 = vmatprep.subr.mxu0 0.0
    %90 = vmatpush1.msra.mxu0 %v81
    %91 = vmatprep.subr.mxu0 0.0
    %92 = vmatpush1.msra.mxu0 %v80
    %93 = vmatprep.subr.mxu0 0.0
    %94 = vmatpush1.msra.mxu0 %v79
    %95 = vmatprep.subr.mxu0 0.0
    %96 = vmatpush1.msra.mxu0 %v78
    %97 = vmatprep.subr.mxu0 0.0
    %98 = vmatpush1.msra.mxu0 %v77
    %99 = vmatprep.subr.mxu0 0.0
    %100 = vmatpush1.msra.mxu0 %v76
    %101 = vmatprep.subr.mxu0 0.0
    %102 = vmatpush1.msra.mxu0 %v75
    %103 = vmatprep.subr.mxu0 0.0
    %104 = vmatpush1.msra.mxu0 %v74
    %105 = vmatprep.subr.mxu0 0.0
    %106 = vmatpush1.msra.mxu0 %v73
    %107 = vmatprep.subr.mxu0 0.0
    %108 = vmatpush1.msra.mxu0 %v72
    %109 = vmatprep.subr.mxu0 0.0
    %110 = vmatpush1.msra.mxu0 %v71
    %111 = vmatprep.subr.mxu0 0.0
    %112 = vmatpush1.msra.mxu0 %v70
    %113 = vmatprep.subr.mxu0 0.0
    %114 = vmatpush1.msra.mxu0 %v69
    %115 = vmatprep.subr.mxu0 0.0
    %116 = vmatpush1.msra.mxu0 %v68
    %117 = vmatprep.subr.mxu0 0.0
    %118 = vmatpush1.msra.mxu0 %v67
    %119 = vmatprep.subr.mxu0 0.0
    %120 = vmatpush1.msra.mxu0 %v66
    %121 = vmatprep.subr.mxu0 0.0
    %122 = vmatpush2.msra.mxu0 0.0
    %123 = vmatprep.subr.mxu0 0.0
    %124 = vmatpush2.msra.mxu0 0.0
    %125 = vmatprep.subr.mxu0 0.0
    %126 = vmatpush2.msra.mxu0 0.0
    %127 = vmatprep.subr.mxu0 0.0
    %128 = vmatpush2.msra.mxu0 0.0
    %129 = vmatprep.subr.mxu0 0.0
    %130 = vmatpush2.msra.mxu0 0.0
    %131 = vmatprep.subr.mxu0 0.0
    %132 = vmatpush2.msra.mxu0 0.0
    %133 = vmatprep.subr.mxu0 0.0
    %134 = vmatpush2.msra.mxu0 0.0
    %135 = vmatprep.subr.mxu0 0.0
    %136 = vmatpush2.msra.mxu0 0.0
    %137 = vmatprep.subr.mxu0 0.0
    %138 = vmatpush2.msra.mxu0 0.0
    %139 = vmatprep.subr.mxu0 0.0
    %140 = vmatpush2.msra.mxu0 0.0
    %141 = vmatprep.subr.mxu0 0.0
    %142 = vmatpush2.msra.mxu0 0.0
    %143 = vmatprep.subr.mxu0 0.0
    %144 = vmatpush2.msra.mxu0 0.0
    %145 = vmatprep.subr.mxu0 0.0
    %146 = vmatpush2.msra.mxu0 0.0
    %147 = vmatprep.subr.mxu0 0.0
    %148 = vmatpush2.msra.mxu0 0.0
    %149 = vmatprep.subr.mxu0 0.0
    %150 = vmatpush2.msra.mxu0 0.0
    %151 = vmatprep.subr.mxu0 0.0
    %152 = vmatpush2.msra.mxu0 0.0
    %153 = vmatprep.mubr.f32.mxu0 0.0
    %154 = vmatmul.mubr.f32.gmra.mxu0 %v62
    %v155 = vpop.f32.mrf.mxu0
    %v156 = vadd.f32 %v87, %v155
    %v157 = vpop.f32.mrf.mxu0
    %158 = vmatprep.mubr.f32.mxu0 0.0
    %159 = vmatmul.mubr.f32.gmra.mxu0 %v63
    %v160 = vpop.f32.mrf.mxu0
    %v161 = vadd.f32 %v87, %v160
    %v162 = vpop.f32.mrf.mxu0
    %163 = vmatprep.mubr.f32.mxu0 0.0
    %164 = vmatmul.mubr.f32.gmra.mxu0 %v64
    %v165 = vpop.f32.mrf.mxu0
    %v166 = vadd.f32 %v87, %v165
    %v167 = vpop.f32.mrf.mxu0
    %168 = vmatprep.mubr.f32.mxu0 0.0
    %169 = vmatmul.mubr.f32.gmra.mxu0 %v65
    %v170 = vpop.f32.mrf.mxu0
    %v171 = vadd.f32 %v87, %v170
    %v172 = vpop.f32.mrf.mxu0
    %173 = vdwg.mxu0
    %v174 = vmax.f32 %v156, 0.0
    %v175 = vmax.f32 %v161, 0.0
    %v176 = vmax.f32 %v166, 0.0
    %v177 = vmax.f32 %v171, 0.0
    %v178 = vld [vmem:[#allocation7] sm:$0xff]
    %v179 = vld [vmem:[#allocation7 + $0x8] sm:$0xff]
    %v180 = vld [vmem:[#allocation7 + $0x10] sm:$0xff]
    %v181 = vld [vmem:[#allocation7 + $0x18] sm:$0xff]
    %v182 = vld [vmem:[#allocation7 + $0x20] sm:$0xff]
    %v183 = vld [vmem:[#allocation7 + $0x28] sm:$0xff]
    %v184 = vld [vmem:[#allocation7 + $0x30] sm:$0xff]
    %v185 = vld [vmem:[#allocation7 + $0x38] sm:$0xff]
    %v186 = vld [vmem:[#allocation7 + $0x40] sm:$0xff]
    %v187 = vld [vmem:[#allocation7 + $0x48] sm:$0xff]
    %v188 = vld [vmem:[#allocation7 + $0x50] sm:$0xff]
    %v189 = vld [vmem:[#allocation7 + $0x58] sm:$0xff]
    %v190 = vld [vmem:[#allocation7 + $0x60] sm:$0xff]
    %v191 = vld [vmem:[#allocation7 + $0x68] sm:$0xff]
    %v192 = vld [vmem:[#allocation7 + $0x70] sm:$0xff]
    %v193 = vld [vmem:[#allocation7 + $0x78] sm:$0xff]
    %v194 = vld [vmem:[%s4] sm:$0x1]
    %v196 = vlaneseq
    %v197 = vshrl.u32 %v196, 7
    %v198 = vsub.s32 0, %v197
    %v199 = vrot.slane %v194, %v198
    %201 = vmatprep.subr.mxu0 0.0
    %202 = vmatpush1.msra.mxu0 %v193
    %203 = vmatprep.subr.mxu0 0.0
    %204 = vmatpush1.msra.mxu0 %v192
    %205 = vmatprep.subr.mxu0 0.0
    %206 = vmatpush1.msra.mxu0 %v191
    %207 = vmatprep.subr.mxu0 0.0
    %208 = vmatpush1.msra.mxu0 %v190
    %209 = vmatprep.subr.mxu0 0.0
    %210 = vmatpush1.msra.mxu0 %v189
    %211 = vmatprep.subr.mxu0 0.0
    %212 = vmatpush1.msra.mxu0 %v188
    %213 = vmatprep.subr.mxu0 0.0
    %214 = vmatpush1.msra.mxu0 %v187
    %215 = vmatprep.subr.mxu0 0.0
    %216 = vmatpush1.msra.mxu0 %v186
    %217 = vmatprep.subr.mxu0 0.0
    %218 = vmatpush1.msra.mxu0 %v185
    %219 = vmatprep.subr.mxu0 0.0
    %220 = vmatpush1.msra.mxu0 %v184
    %221 = vmatprep.subr.mxu0 0.0
    %222 = vmatpush1.msra.mxu0 %v183
    %223 = vmatprep.subr.mxu0 0.0
    %224 = vmatpush1.msra.mxu0 %v182
    %225 = vmatprep.subr.mxu0 0.0
    %226 = vmatpush1.msra.mxu0 %v181
    %227 = vmatprep.subr.mxu0 0.0
    %228 = vmatpush1.msra.mxu0 %v180
    %229 = vmatprep.subr.mxu0 0.0
    %230 = vmatpush1.msra.mxu0 %v179
    %231 = vmatprep.subr.mxu0 0.0
    %232 = vmatpush1.msra.mxu0 %v178
    %233 = vmatprep.subr.mxu0 0.0
    %234 = vmatpush2.msra.mxu0 0.0
    %235 = vmatprep.subr.mxu0 0.0
    %236 = vmatpush2.msra.mxu0 0.0
    %237 = vmatprep.subr.mxu0 0.0
    %238 = vmatpush2.msra.mxu0 0.0
    %239 = vmatprep.subr.mxu0 0.0
    %240 = vmatpush2.msra.mxu0 0.0
    %241 = vmatprep.subr.mxu0 0.0
    %242 = vmatpush2.msra.mxu0 0.0
    %243 = vmatprep.subr.mxu0 0.0
    %244 = vmatpush2.msra.mxu0 0.0
    %245 = vmatprep.subr.mxu0 0.0
    %246 = vmatpush2.msra.mxu0 0.0
    %247 = vmatprep.subr.mxu0 0.0
    %248 = vmatpush2.msra.mxu0 0.0
    %249 = vmatprep.subr.mxu0 0.0
    %250 = vmatpush2.msra.mxu0 0.0
    %251 = vmatprep.subr.mxu0 0.0
    %252 = vmatpush2.msra.mxu0 0.0
    %253 = vmatprep.subr.mxu0 0.0
    %254 = vmatpush2.msra.mxu0 0.0
    %255 = vmatprep.subr.mxu0 0.0
    %256 = vmatpush2.msra.mxu0 0.0
    %257 = vmatprep.subr.mxu0 0.0
    %258 = vmatpush2.msra.mxu0 0.0
    %259 = vmatprep.subr.mxu0 0.0
    %260 = vmatpush2.msra.mxu0 0.0
    %261 = vmatprep.subr.mxu0 0.0
    %262 = vmatpush2.msra.mxu0 0.0
    %263 = vmatprep.subr.mxu0 0.0
    %264 = vmatpush2.msra.mxu0 0.0
    %265 = vmatprep.mubr.f32.mxu0 0.0
    %266 = vmatmul.mubr.f32.gmra.mxu0 %v174
    %v267 = vpop.f32.mrf.mxu0
    %v268 = vadd.f32 %v199, %v267
    %v269 = vpop.f32.mrf.mxu0
    %270 = vmatprep.mubr.f32.mxu0 0.0
    %271 = vmatmul.mubr.f32.gmra.mxu0 %v175
    %v272 = vpop.f32.mrf.mxu0
    %v273 = vadd.f32 %v199, %v272
    %v274 = vpop.f32.mrf.mxu0
    %275 = vmatprep.mubr.f32.mxu0 0.0
    %276 = vmatmul.mubr.f32.gmra.mxu0 %v176
    %v277 = vpop.f32.mrf.mxu0
    %v278 = vadd.f32 %v199, %v277
    %v279 = vpop.f32.mrf.mxu0
    %280 = vmatprep.mubr.f32.mxu0 0.0
    %281 = vmatmul.mubr.f32.gmra.mxu0 %v177
    %v282 = vpop.f32.mrf.mxu0
    %v283 = vadd.f32 %v199, %v282
    %v284 = vpop.f32.mrf.mxu0
    %285 = vdwg.mxu0
    %286 = vst [vmem:[#allocation8] sm:$0xff] %v268
    %287 = vst [vmem:[#allocation8 + $0x8] sm:$0xff] %v273
    %288 = vst [vmem:[#allocation8 + $0x10] sm:$0xff] %v278
    %289 = vst [vmem:[#allocation8 + $0x18] sm:$0xff] %v283
    // Predicated region
    $region34: #{tpu_custom_call.1} parent=1 // pred_check
      _
    $region35: #{tpu_custom_call.1} parent=1 // pred_check_branch
      %291 = sbr.rel (0) target = $region37
    $region36: #{tpu_custom_call.1} parent=1 // pred_region
      %s293 = ssub.s32 512, 512
      %294 = vsyncadd [#allocation4], %s293
      %s295 = sshll.u32 [#allocation8], 4
      %s296 = int_to_ptr.vmem [resolvable:$true] %s295
      %301 = dma.vmem_to_hbm [thread:$0]  %s296, 512, %s5, [#allocation4], 128, 128, 8
    $region37: #{tpu_custom_call.1} parent=1 // pred_fallthru
      _
    // Predicated region
    $region38: #{tpu_custom_call.1} parent=1 // pred_check
      _
    $region39: #{tpu_custom_call.1} parent=1 // pred_check_branch
      %303 = sbr.rel (0) target = $region41
    $region40: #{tpu_custom_call.1} parent=1 // pred_region
      %304 = dma.done [#allocation4], 512
    $region41: #{tpu_custom_call.1} parent=1 // pred_fallthru
      _
    %305 = vsyncpa [#allocation3], 1
    %306 = vsyncpa [#allocation6], 1
    %307 = vsyncpa [#allocation4], 1

// kernel: tpu_custom_call.1
$region0: #{tpu_custom_call.1}
  #allocation0 [shape = 'u32[]', space=smem, size = 0x4, offset = 0x4, fixed_abs, tag = 'smem constant byte address 0x4 - core index']
  #allocation1 [shape = 'u32[144,128]{1,0:T(1,128)}', space=vmem, size = 0x12000, scoped, tag = 'internal scratch']
  %s0 = inlined_call_operand.hbm [shape: f32[32,128], index: 0, kind: input, shape index: {}]
  %s1 = inlined_call_operand.hbm [shape: f32[128,128], index: 1, kind: input, shape index: {}]
  %s2 = inlined_call_operand.vmem [shape: f32[1,128], index: 2, kind: input, shape index: {}]
  %s3 = inlined_call_operand.hbm [shape: f32[128,128], index: 3, kind: input, shape index: {}]
  %s4 = inlined_call_operand.vmem [shape: f32[1,128], index: 4, kind: input, shape index: {}]
  %s5 = inlined_call_operand.hbm [shape: f32[32,128], index: 5, kind: output, shape index: {}]
  %s6 = sld [smem:[#allocation0]]
  $region42: #{tpu_custom_call.1} parent=0
    _
  %s8 = ssub.s32 1, %s6
  %s9 = scalar_select 0, %s8, %s6
  $region1: #{tpu_custom_call.1} parent=0
    #allocation2 [shape = 'u8[16384]{0}', space=vmem, size = 0x4000, scoped, tag = 'input window, operand 0, single buffered']
    #allocation3 [shape = 's32[1]{0}', space=sflag, size = 0x4, scoped, tag = 'scoped memory for tpu_custom_call.1']
    #allocation4 [shape = 's32[1]{0}', space=sflag, size = 0x4, scoped, tag = 'scoped memory for tpu_custom_call.1']
    #allocation5 [shape = 'u8[65536]{0}', space=vmem, size = 0x10000, scoped, tag = 'input window, operand 1, single buffered']
    #allocation6 [shape = 's32[1]{0}', space=sflag, size = 0x4, scoped, tag = 'scoped memory for tpu_custom_call.1']
    #allocation7 [shape = 'u8[65536]{0}', space=vmem, size = 0x10000, scoped, tag = 'input window, operand 3, single buffered']
    #allocation8 [shape = 'u8[16384]{0}', space=vmem, size = 0x4000, scoped, tag = 'output window, operand 0, single buffered']
    %10 = vsyncpa [#allocation3], 0
    %11 = vsyncpa [#allocation6], 0
    %12 = vsyncpa [#allocation4], 0
    // Predicated region
    $region2: #{tpu_custom_call.1} parent=1 // pred_check
      _
    $region3: #{tpu_custom_call.1} parent=1 // pred_check_branch
      %14 = sbr.rel (0) target = $region5
    $region4: #{tpu_custom_call.1} parent=1 // pred_region
      %s16 = ssub.s32 512, 512
      %17 = vsyncadd [#allocation3], %s16
      %s18 = sshll.u32 [#allocation2], 4
      %s19 = int_to_ptr.vmem [resolvable:$true] %s18
      %24 = dma.hbm_to_vmem [thread:$0]  %s0, 512, %s19, [#allocation3], 128, 128, 8
    $region5: #{tpu_custom_call.1} parent=1 // pred_fallthru
      _
    // Predicated region
    $region6: #{tpu_custom_call.1} parent=1 // pred_check
      _
    $region7: #{tpu_custom_call.1} parent=1 // pred_check_branch
      %26 = sbr.rel (0) target = $region9
    $region8: #{tpu_custom_call.1} parent=1 // pred_region
      %s28 = ssub.s32 2048, 2048
      %29 = vsyncadd [#allocation6], %s28
      %s30 = sshll.u32 [#allocation5], 4
      %s31 = int_to_ptr.vmem [resolvable:$true] %s30
      %36 = dma.hbm_to_vmem [thread:$0]  %s1, 2048, %s31, [#allocation6], 128, 128, 8
    $region9: #{tpu_custom_call.1} parent=1 // pred_fallthru
      _
    // Predicated region
    $region10: #{tpu_custom_call.1} parent=1 // pred_check
      _
    $region11: #{tpu_custom_call.1} parent=1 // pred_check_branch
      %38 = sbr.rel (0) target = $region13
    $region12: #{tpu_custom_call.1} parent=1 // pred_region
      _
    $region13: #{tpu_custom_call.1} parent=1 // pred_fallthru
      _
    // Predicated region
    $region14: #{tpu_custom_call.1} parent=1 // pred_check
      _
    $region15: #{tpu_custom_call.1} parent=1 // pred_check_branch
      %40 = sbr.rel (0) target = $region17
    $region16: #{tpu_custom_call.1} parent=1 // pred_region
      %s42 = ssub.s32 2048, 2048
      %43 = vsyncadd [#allocation6], %s42
      %s44 = sshll.u32 [#allocation7], 4
      %s45 = int_to_ptr.vmem [resolvable:$true] %s44
      %50 = dma.hbm_to_vmem [thread:$0]  %s3, 2048, %s45, [#allocation6], 128, 128, 8
    $region17: #{tpu_custom_call.1} parent=1 // pred_fallthru
      _
    // Predicated region
    $region18: #{tpu_custom_call.1} parent=1 // pred_check
      _
    $region19: #{tpu_custom_call.1} parent=1 // pred_check_branch
      %52 = sbr.rel (0) target = $region21
    $region20: #{tpu_custom_call.1} parent=1 // pred_region
      _
    $region21: #{tpu_custom_call.1} parent=1 // pred_fallthru
      _
    // Predicated region
    $region22: #{tpu_custom_call.1} parent=1 // pred_check
      _
    $region23: #{tpu_custom_call.1} parent=1 // pred_check_branch
      %54 = sbr.rel (0) target = $region25
    $region24: #{tpu_custom_call.1} parent=1 // pred_region
      %55 = dma.done [#allocation3], 512
    $region25: #{tpu_custom_call.1} parent=1 // pred_fallthru
      _
    // Predicated region
    $region26: #{tpu_custom_call.1} parent=1 // pred_check
      _
    $region27: #{tpu_custom_call.1} parent=1 // pred_check_branch
      %57 = sbr.rel (0) target = $region29
    $region28: #{tpu_custom_call.1} parent=1 // pred_region
      %58 = dma.done [#allocation6], 2048
    $region29: #{tpu_custom_call.1} parent=1 // pred_fallthru
      _
    // Predicated region
    $region30: #{tpu_custom_call.1} parent=1 // pred_check
      _
    $region31: #{tpu_custom_call.1} parent=1 // pred_check_branch
      %60 = sbr.rel (0) target = $region33
    $region32: #{tpu_custom_call.1} parent=1 // pred_region
      %61 = dma.done [#allocation6], 2048
    $region33: #{tpu_custom_call.1} parent=1 // pred_fallthru
      _
    %v62 = vld [vmem:[#allocation2] sm:$0xff]
    %v63 = vld [vmem:[#allocation2 + $0x8] sm:$0xff]
    %v64 = vld [vmem:[#allocation2 + $0x10] sm:$0xff]
    %v65 = vld [vmem:[#allocation2 + $0x18] sm:$0xff]
    %v66 = vld [vmem:[#allocation5] sm:$0xff]
    %v67 = vld [vmem:[#allocation5 + $0x8] sm:$0xff]
    %v68 = vld [vmem:[#allocation5 + $0x10] sm:$0xff]
    %v69 = vld [vmem:[#allocation5 + $0x18] sm:$0xff]
    %v70 = vld [vmem:[#allocation5 + $0x20] sm:$0xff]
    %v71 = vld [vmem:[#allocation5 + $0x28] sm:$0xff]
    %v72 = vld [vmem:[#allocation5 + $0x30] sm:$0xff]
    %v73 = vld [vmem:[#allocation5 + $0x38] sm:$0xff]
    %v74 = vld [vmem:[#allocation5 + $0x40] sm:$0xff]
    %v75 = vld [vmem:[#allocation5 + $0x48] sm:$0xff]
    %v76 = vld [vmem:[#allocation5 + $0x50] sm:$0xff]
    %v77 = vld [vmem:[#allocation5 + $0x58] sm:$0xff]
    %v78 = vld [vmem:[#allocation5 + $0x60] sm:$0xff]
    %v79 = vld [vmem:[#allocation5 + $0x68] sm:$0xff]
    %v80 = vld [vmem:[#allocation5 + $0x70] sm:$0xff]
    %v81 = vld [vmem:[#allocation5 + $0x78] sm:$0xff]
    %v82 = vld [vmem:[%s2] sm:$0x1]
    %v84 = vlaneseq
    %v85 = vshrl.u32 %v84, 7
    %v86 = vsub.s32 0, %v85
    %v87 = vrot.slane %v82, %v86
    %89 = vmatprep.subr.mxu0 0.0
    %90 = vmatpush1.msra.mxu0 %v81
    %91 = vmatprep.subr.mxu0 0.0
    %92 = vmatpush1.msra.mxu0 %v80
    %93 = vmatprep.subr.mxu0 0.0
    %94 = vmatpush1.msra.mxu0 %v79
    %95 = vmatprep.subr.mxu0 0.0
    %96 = vmatpush1.msra.mxu0 %v78
    %97 = vmatprep.subr.mxu0 0.0
    %98 = vmatpush1.msra.mxu0 %v77
    %99 = vmatprep.subr.mxu0 0.0
    %100 = vmatpush1.msra.mxu0 %v76
    %101 = vmatprep.subr.mxu0 0.0
    %102 = vmatpush1.msra.mxu0 %v75
    %103 = vmatprep.subr.mxu0 0.0
    %104 = vmatpush1.msra.mxu0 %v74
    %105 = vmatprep.subr.mxu0 0.0
    %106 = vmatpush1.msra.mxu0 %v73
    %107 = vmatprep.subr.mxu0 0.0
    %108 = vmatpush1.msra.mxu0 %v72
    %109 = vmatprep.subr.mxu0 0.0
    %110 = vmatpush1.msra.mxu0 %v71
    %111 = vmatprep.subr.mxu0 0.0
    %112 = vmatpush1.msra.mxu0 %v70
    %113 = vmatprep.subr.mxu0 0.0
    %114 = vmatpush1.msra.mxu0 %v69
    %115 = vmatprep.subr.mxu0 0.0
    %116 = vmatpush1.msra.mxu0 %v68
    %117 = vmatprep.subr.mxu0 0.0
    %118 = vmatpush1.msra.mxu0 %v67
    %119 = vmatprep.subr.mxu0 0.0
    %120 = vmatpush1.msra.mxu0 %v66
    %121 = vmatprep.subr.mxu0 0.0
    %122 = vmatpush2.msra.mxu0 0.0
    %123 = vmatprep.subr.mxu0 0.0
    %124 = vmatpush2.msra.mxu0 0.0
    %125 = vmatprep.subr.mxu0 0.0
    %126 = vmatpush2.msra.mxu0 0.0
    %127 = vmatprep.subr.mxu0 0.0
    %128 = vmatpush2.msra.mxu0 0.0
    %129 = vmatprep.subr.mxu0 0.0
    %130 = vmatpush2.msra.mxu0 0.0
    %131 = vmatprep.subr.mxu0 0.0
    %132 = vmatpush2.msra.mxu0 0.0
    %133 = vmatprep.subr.mxu0 0.0
    %134 = vmatpush2.msra.mxu0 0.0
    %135 = vmatprep.subr.mxu0 0.0
    %136 = vmatpush2.msra.mxu0 0.0
    %137 = vmatprep.subr.mxu0 0.0
    %138 = vmatpush2.msra.mxu0 0.0
    %139 = vmatprep.subr.mxu0 0.0
    %140 = vmatpush2.msra.mxu0 0.0
    %141 = vmatprep.subr.mxu0 0.0
    %142 = vmatpush2.msra.mxu0 0.0
    %143 = vmatprep.subr.mxu0 0.0
    %144 = vmatpush2.msra.mxu0 0.0
    %145 = vmatprep.subr.mxu0 0.0
    %146 = vmatpush2.msra.mxu0 0.0
    %147 = vmatprep.subr.mxu0 0.0
    %148 = vmatpush2.msra.mxu0 0.0
    %149 = vmatprep.subr.mxu0 0.0
    %150 = vmatpush2.msra.mxu0 0.0
    %151 = vmatprep.subr.mxu0 0.0
    %152 = vmatpush2.msra.mxu0 0.0
    %153 = vmatprep.mubr.f32.mxu0 0.0
    %154 = vmatmul.mubr.f32.gmra.mxu0 %v62
    %v155 = vpop.f32.mrf.mxu0
    %v156 = vadd.f32 %v87, %v155
    %v157 = vpop.f32.mrf.mxu0
    %158 = vmatprep.mubr.f32.mxu0 0.0
    %159 = vmatmul.mubr.f32.gmra.mxu0 %v63
    %v160 = vpop.f32.mrf.mxu0
    %v161 = vadd.f32 %v87, %v160
    %v162 = vpop.f32.mrf.mxu0
    %163 = vmatprep.mubr.f32.mxu0 0.0
    %164 = vmatmul.mubr.f32.gmra.mxu0 %v64
    %v165 = vpop.f32.mrf.mxu0
    %v166 = vadd.f32 %v87, %v165
    %v167 = vpop.f32.mrf.mxu0
    %168 = vmatprep.mubr.f32.mxu0 0.0
    %169 = vmatmul.mubr.f32.gmra.mxu0 %v65
    %v170 = vpop.f32.mrf.mxu0
    %v171 = vadd.f32 %v87, %v170
    %v172 = vpop.f32.mrf.mxu0
    %173 = vdwg.mxu0
    %v174 = vmax.f32 %v156, 0.0
    %v175 = vmax.f32 %v161, 0.0
    %v176 = vmax.f32 %v166, 0.0
    %v177 = vmax.f32 %v171, 0.0
    %v178 = vld [vmem:[#allocation7] sm:$0xff]
    %v179 = vld [vmem:[#allocation7 + $0x8] sm:$0xff]
    %v180 = vld [vmem:[#allocation7 + $0x10] sm:$0xff]
    %v181 = vld [vmem:[#allocation7 + $0x18] sm:$0xff]
    %v182 = vld [vmem:[#allocation7 + $0x20] sm:$0xff]
    %v183 = vld [vmem:[#allocation7 + $0x28] sm:$0xff]
    %v184 = vld [vmem:[#allocation7 + $0x30] sm:$0xff]
    %v185 = vld [vmem:[#allocation7 + $0x38] sm:$0xff]
    %v186 = vld [vmem:[#allocation7 + $0x40] sm:$0xff]
    %v187 = vld [vmem:[#allocation7 + $0x48] sm:$0xff]
    %v188 = vld [vmem:[#allocation7 + $0x50] sm:$0xff]
    %v189 = vld [vmem:[#allocation7 + $0x58] sm:$0xff]
    %v190 = vld [vmem:[#allocation7 + $0x60] sm:$0xff]
    %v191 = vld [vmem:[#allocation7 + $0x68] sm:$0xff]
    %v192 = vld [vmem:[#allocation7 + $0x70] sm:$0xff]
    %v193 = vld [vmem:[#allocation7 + $0x78] sm:$0xff]
    %v194 = vld [vmem:[%s4] sm:$0x1]
    %v196 = vlaneseq
    %v197 = vshrl.u32 %v196, 7
    %v198 = vsub.s32 0, %v197
    %v199 = vrot.slane %v194, %v198
    %201 = vmatprep.subr.mxu0 0.0
    %202 = vmatpush1.msra.mxu0 %v193
    %203 = vmatprep.subr.mxu0 0.0
    %204 = vmatpush1.msra.mxu0 %v192
    %205 = vmatprep.subr.mxu0 0.0
    %206 = vmatpush1.msra.mxu0 %v191
    %207 = vmatprep.subr.mxu0 0.0
    %208 = vmatpush1.msra.mxu0 %v190
    %209 = vmatprep.subr.mxu0 0.0
    %210 = vmatpush1.msra.mxu0 %v189
    %211 = vmatprep.subr.mxu0 0.0
    %212 = vmatpush1.msra.mxu0 %v188
    %213 = vmatprep.subr.mxu0 0.0
    %214 = vmatpush1.msra.mxu0 %v187
    %215 = vmatprep.subr.mxu0 0.0
    %216 = vmatpush1.msra.mxu0 %v186
    %217 = vmatprep.subr.mxu0 0.0
    %218 = vmatpush1.msra.mxu0 %v185
    %219 = vmatprep.subr.mxu0 0.0
    %220 = vmatpush1.msra.mxu0 %v184
    %221 = vmatprep.subr.mxu0 0.0
    %222 = vmatpush1.msra.mxu0 %v183
    %223 = vmatprep.subr.mxu0 0.0
    %224 = vmatpush1.msra.mxu0 %v182
    %225 = vmatprep.subr.mxu0 0.0
    %226 = vmatpush1.msra.mxu0 %v181
    %227 = vmatprep.subr.mxu0 0.0
    %228 = vmatpush1.msra.mxu0 %v180
    %229 = vmatprep.subr.mxu0 0.0
    %230 = vmatpush1.msra.mxu0 %v179
    %231 = vmatprep.subr.mxu0 0.0
    %232 = vmatpush1.msra.mxu0 %v178
    %233 = vmatprep.subr.mxu0 0.0
    %234 = vmatpush2.msra.mxu0 0.0
    %235 = vmatprep.subr.mxu0 0.0
    %236 = vmatpush2.msra.mxu0 0.0
    %237 = vmatprep.subr.mxu0 0.0
    %238 = vmatpush2.msra.mxu0 0.0
    %239 = vmatprep.subr.mxu0 0.0
    %240 = vmatpush2.msra.mxu0 0.0
    %241 = vmatprep.subr.mxu0 0.0
    %242 = vmatpush2.msra.mxu0 0.0
    %243 = vmatprep.subr.mxu0 0.0
    %244 = vmatpush2.msra.mxu0 0.0
    %245 = vmatprep.subr.mxu0 0.0
    %246 = vmatpush2.msra.mxu0 0.0
    %247 = vmatprep.subr.mxu0 0.0
    %248 = vmatpush2.msra.mxu0 0.0
    %249 = vmatprep.subr.mxu0 0.0
    %250 = vmatpush2.msra.mxu0 0.0
    %251 = vmatprep.subr.mxu0 0.0
    %252 = vmatpush2.msra.mxu0 0.0
    %253 = vmatprep.subr.mxu0 0.0
    %254 = vmatpush2.msra.mxu0 0.0
    %255 = vmatprep.subr.mxu0 0.0
    %256 = vmatpush2.msra.mxu0 0.0
    %257 = vmatprep.subr.mxu0 0.0
    %258 = vmatpush2.msra.mxu0 0.0
    %259 = vmatprep.subr.mxu0 0.0
    %260 = vmatpush2.msra.mxu0 0.0
    %261 = vmatprep.subr.mxu0 0.0
    %262 = vmatpush2.msra.mxu0 0.0
    %263 = vmatprep.subr.mxu0 0.0
    %264 = vmatpush2.msra.mxu0 0.0
    %265 = vmatprep.mubr.f32.mxu0 0.0
    %266 = vmatmul.mubr.f32.gmra.mxu0 %v174
    %v267 = vpop.f32.mrf.mxu0
    %v268 = vadd.f32 %v199, %v267
    %v269 = vpop.f32.mrf.mxu0
    %270 = vmatprep.mubr.f32.mxu0 0.0
    %271 = vmatmul.mubr.f32.gmra.mxu0 %v175
    %v272 = vpop.f32.mrf.mxu0
    %v273 = vadd.f32 %v199, %v272
    %v274 = vpop.f32.mrf.mxu0
    %275 = vmatprep.mubr.f32.mxu0 0.0
    %276 = vmatmul.mubr.f32.gmra.mxu0 %v176
    %v277 = vpop.f32.mrf.mxu0
    %v278 = vadd.f32 %v199, %v277
    %v279 = vpop.f32.mrf.mxu0
    %280 = vmatprep.mubr.f32.mxu0 0.0
    %281 = vmatmul.mubr.f32.gmra.mxu0 %v177
    %v282 = vpop.f32.mrf.mxu0
    %v283 = vadd.f32 %v199, %v282
    %v284 = vpop.f32.mrf.mxu0
    %285 = vdwg.mxu0
    %286 = vst [vmem:[#allocation8] sm:$0xff] %v268
    %287 = vst [vmem:[#allocation8 + $0x8] sm:$0xff] %v273
    %288 = vst [vmem:[#allocation8 + $0x10] sm:$0xff] %v278
    %289 = vst [vmem:[#allocation8 + $0x18] sm:$0xff] %v283
    // Predicated region
    $region34: #{tpu_custom_call.1} parent=1 // pred_check
      _
    $region35: #{tpu_custom_call.1} parent=1 // pred_check_branch
      %291 = sbr.rel (0) target = $region37
    $region36: #{tpu_custom_call.1} parent=1 // pred_region
      %s293 = ssub.s32 512, 512
      %294 = vsyncadd [#allocation4], %s293
      %s295 = sshll.u32 [#allocation8], 4
      %s296 = int_to_ptr.vmem [resolvable:$true] %s295
      %301 = dma.vmem_to_hbm [thread:$0]  %s296, 512, %s5, [#allocation4], 128, 128, 8
    $region37: #{tpu_custom_call.1} parent=1 // pred_fallthru
      _
    // Predicated region
    $region38: #{tpu_custom_call.1} parent=1 // pred_check
      _
    $region39: #{tpu_custom_call.1} parent=1 // pred_check_branch
      %303 = sbr.rel (0) target = $region41
    $region40: #{tpu_custom_call.1} parent=1 // pred_region
      %304 = dma.done [#allocation4], 512
    $region41: #{tpu_custom_call.1} parent=1 // pred_fallthru
      _
    %305 = vsyncpa [#allocation3], 1
    %306 = vsyncpa [#allocation6], 1
    %307 = vsyncpa [#allocation4], 1

</llo_original>
